<compile_context>
chip_gen: v7x
topology: tpu7x:2x2x1
jax: 0.10.0
libtpu: 0.0.40
codegen_flags: <defaults>
</compile_context>

<pallas_src>
import functools

import numpy as np

import jax
import jax.numpy as jnp
from jax.experimental import pallas as pl
from jax.experimental.pallas import tpu as pltpu


def _dup_matrix(tm, W):
    """0/1 matrix U (tm, 4*tm): flat low-res tile @ U = flat nearest-x2-upsampled tile.

    Low-res flat index k = i*W + j (whole rows per tile).  Hi-res tile, viewed per low-res row as
    a 4W chunk [row 2i | row 2i+1], has flat index m = i*4W + a*2W + 2j + b, a,b in {0,1}.
    """
    m = np.arange(4 * tm)
    src = (m // (4 * W)) * W + (m % (2 * W)) // 2          # low-res source index per hi-res slot
    u = (np.arange(tm)[:, None] == src[None, :]).astype(np.float32)
    return jnp.asarray(u, dtype=jnp.bfloat16)


def _pick_tile(M, W, Cin, Cout, Cf, out_bytes):
    """Largest whole-row, lane-aligned spatial tile whose working set fits a ~22 MiB VMEM budget."""
    Ctot = Cout + Cf

    def need(tm):
        # streamed blocks (double buffered): x (f32), feature_map, output
        stream = 2 * (Cin * tm * 4 + Cf * 4 * tm * out_bytes + Ctot * 4 * tm * out_bytes)
        # "constant" blocks: dup matrix U, weight, bias -- counted double buffered (default pipelining)
        const = 2 * (tm * 4 * tm * 2 + Cout * Cin * 2 + Cout * 4)
        # in-kernel temporaries: x bf16, y f32 + y bf16, upsampled f32 result
        interm = Cin * tm * 2 + Cout * tm * 6 + Cout * 4 * tm * 4
        return stream + const + interm

    budget = 22 << 20
    cands = set()
    if M <= 1024:                       # whole image per step (always layout-legal)
        cands.add(M)
    k = 1
    while k * W <= min(512, M):         # whole-row multiples that are also 128-lane aligned
        t = k * W
        if t % 128 == 0:
            cands.add(t)
        k *= 2
    if not cands:                       # e.g. very wide, non-power-of-two rows: best effort
        cands.add(min(M, max(1, 512 // W) * W))
    cands = sorted(cands, reverse=True)
    for tm in cands:
        if need(tm) <= budget:
            return tm, need(tm)
    tm = cands[-1]
    return tm, need(tm)


def _upsample_concat_kernel(x_ref, f_ref, w_ref, b_ref, u_ref, o_ref, *, cout, m_total, tm):
    # x_ref: (Cin, tm)        f32 low-res activations, whole rows, flat spatial on lanes
    # f_ref: (Cf, 4*tm)       skip-connection tile (hi-res, same flat view as the output)
    # w_ref: (Cout, Cin)      bf16 1x1-conv weights
    # b_ref: (Cout, 1)        f32 bias
    # u_ref: (tm, 4*tm)       bf16 0/1 nearest-upsample duplication matrix
    # o_ref: (Cout+Cf, 4*tm)  output tile: conv+upsample rows [:Cout], skip copy rows [Cout:]
    x = x_ref[...].astype(jnp.bfloat16)                                    # in-kernel cast (review #2)
    y = jnp.dot(w_ref[...], x, preferred_element_type=jnp.float32)        # (Cout, tm), f32 accumulation

    if m_total % tm != 0:
        # Ragged last tile: zero out-of-range lanes so OOB garbage cannot leak (0*NaN) through
        # the duplication matmul into valid output positions.
        lane = jax.lax.broadcasted_iota(jnp.int32, y.shape, 1)
        y = jnp.where(lane + pl.program_id(1) * tm < m_total, y, 0.0)

    # Nearest x2 upsample (row + column duplication) as one matmul on the idle MXU.
    up = jnp.dot(y.astype(jnp.bfloat16), u_ref[...], preferred_element_type=jnp.float32)  # (Cout, 4*tm)
    o_ref[:cout, :] = (up + b_ref[...]).astype(o_ref.dtype)
    o_ref[cout:, :] = f_ref[...].astype(o_ref.dtype)


def upsample_concat_pallas(x, feature_map, weight, bias):
    """Mirror of UpSample.forward: cat(conv1x1(nearest_up2(x)), feature_map, dim=1).

    x:           (N, C, H, W)        NCHW
    feature_map: (N, Cf, 2H, 2W)     NCHW
    weight:      (C//2, C, 1, 1)     PyTorch Conv2d weight layout
    bias:        (C//2,)
    returns:     (N, C//2 + Cf, 2H, 2W)
    """
    N, Cin, H, W = x.shape
    Cout = weight.shape[0]
    Nf, Cf, H2, W2 = feature_map.shape
    assert Nf == N and H2 == 2 * H and W2 == 2 * W
    Ctot = Cout + Cf
    M = H * W
    out_dtype = jnp.promote_types(x.dtype, feature_map.dtype)

    # Free reshapes of contiguous NCHW tensors (pure metadata / bitcasts):
    x_flat = x.reshape(N, Cin, M)                      # low-res spatial -> lanes
    f_flat = feature_map.reshape(N, Cf, 4 * M)         # (2H,2W) -> (H*4W), element order unchanged
    w_mat = weight.reshape(Cout, Cin).astype(jnp.bfloat16)
    b2d = bias.astype(jnp.float32).reshape(Cout, 1)

    tm, need = _pick_tile(M, W, Cin, Cout, Cf, jnp.dtype(out_dtype).itemsize)
    u_mat = _dup_matrix(tm, W)

    vmem_limit = int(1.25 * need) + (2 << 20)
    vmem_limit = max(16 << 20, min(vmem_limit, 64 << 20))

    kernel = functools.partial(_upsample_concat_kernel, cout=Cout, m_total=M, tm=tm)

    out_flat = pl.pallas_call(
        kernel,
        out_shape=jax.ShapeDtypeStruct((N, Ctot, 4 * M), out_dtype),
        grid_spec=pltpu.PrefetchScalarGridSpec(
            num_scalar_prefetch=0,
            grid=(N, pl.cdiv(M, tm)),
            in_specs=[
                pl.BlockSpec((None, Cin, tm), lambda n, s: (n, 0, s)),
                pl.BlockSpec((None, Cf, 4 * tm), lambda n, s: (n, 0, s)),
                pl.BlockSpec((Cout, Cin), lambda n, s: (0, 0)),
                pl.BlockSpec((Cout, 1), lambda n, s: (0, 0)),
                pl.BlockSpec((tm, 4 * tm), lambda n, s: (0, 0)),
            ],
            out_specs=pl.BlockSpec((None, Ctot, 4 * tm), lambda n, s: (n, 0, s)),
        ),
        compiler_params=pltpu.CompilerParams(
            dimension_semantics=("parallel", "parallel"),
            vmem_limit_bytes=vmem_limit,
        ),
    )(x_flat, f_flat, w_mat, b2d, u_mat)

    return out_flat.reshape(N, Ctot, 2 * H, 2 * W)     # free reshape back to NCHW


upsample_forward = jax.jit(upsample_concat_pallas)


if __name__ == "__main__":
    key = jax.random.PRNGKey(0)
    k_x, k_f, k_w, k_b = jax.random.split(key, 4)

    N, C, H, W = 2, 4, 16, 16
    Cout = C // 2
    Cf = C // 2                      # typical U-Net skip-connection width

    x = jax.random.normal(k_x, (N, C, H, W), dtype=jnp.float32)
    feature_map = jax.random.normal(k_f, (N, Cf, 2 * H, 2 * W), dtype=jnp.float32)

    # Deterministic synthetic Conv2d(channel, channel//2, 1, 1) parameters.
    bound = 1.0 / (C ** 0.5)
    weight = jax.random.uniform(k_w, (Cout, C, 1, 1), jnp.float32, -bound, bound)
    bias = jax.random.uniform(k_b, (Cout,), jnp.float32, -bound, bound)

    out = upsample_forward(x, feature_map, weight, bias)
    out = jax.block_until_ready(out)
    assert out.shape == (N, Cout + Cf, 2 * H, 2 * W)

    # Skip channels must be a bit-exact pass-through.
    assert bool(jnp.array_equal(out[:, Cout:], feature_map))

    # Reference 1: same math as the kernel up to the one extra bf16 rounding of the conv result
    # (bf16 inputs, f32 accumulation, f32 bias) -> medium tolerance covering a single bf16 ulp.
    xb = x.astype(jnp.bfloat16).astype(jnp.float32)
    wb = weight.reshape(Cout, C).astype(jnp.bfloat16).astype(jnp.float32)
    conv_lo = jnp.einsum("nchw,oc->nohw", xb, wb)
    ref1 = jnp.concatenate(
        [jnp.repeat(jnp.repeat(conv_lo, 2, axis=2), 2, axis=3) + bias[None, :, None, None],
         feature_map],
        axis=1,
    )
    assert jnp.allclose(out, ref1, atol=1e-2, rtol=1e-2), float(jnp.max(jnp.abs(out - ref1)))

    # Reference 2: original f32 PyTorch order (upsample -> 1x1 conv -> concat).  The reorder is
    # exact (1x1 conv commutes with nearest upsampling); the loose tolerance covers the bf16 casts.
    up_f32 = jnp.repeat(jnp.repeat(x, 2, axis=2), 2, axis=3)
    conv_f32 = jnp.einsum("nchw,oc->nohw", up_f32, weight.reshape(Cout, C)) \
        + bias[None, :, None, None]
    ref2 = jnp.concatenate([conv_f32, feature_map], axis=1)
    assert jnp.allclose(out, ref2, atol=1e-1, rtol=1e-1)

    print("KERNEL_OK")
</pallas_src>

<mosaic_0001>
module attributes {stable_mosaic.version = 11 : i64} {
  func.func @_upsample_concat_kernel(%arg0: i32, %arg1: i32, %arg2: memref<1x4x256xf32, #tpu.memory_space<vmem>>, %arg3: memref<1x2x1024xf32, #tpu.memory_space<vmem>>, %arg4: memref<2x4xbf16, #tpu.memory_space<vmem>>, %arg5: memref<2x1xf32, #tpu.memory_space<vmem>>, %arg6: memref<256x1024xbf16, #tpu.memory_space<vmem>>, %arg7: memref<1x4x1024xf32, #tpu.memory_space<vmem>>) attributes {dimension_semantics = [#tpu.dimension_semantics<parallel>, #tpu.dimension_semantics<parallel>], iteration_bounds = array<i64: 2, 1>, scalar_prefetch = 0 : i64, scratch_operands = 0 : i64, tpu.core_type = #tpu.core_type<tc>, window_params = [{transform_indices = @transform_0, window_bounds = array<i64: 1, 4, 256>}, {transform_indices = @transform_1, window_bounds = array<i64: 1, 2, 1024>}, {pipeline_mode = #tpu.pipeline_mode<synchronous>, transform_indices = @transform_2, window_bounds = array<i64: 2, 4>}, {pipeline_mode = #tpu.pipeline_mode<synchronous>, transform_indices = @transform_3, window_bounds = array<i64: 2, 1>}, {pipeline_mode = #tpu.pipeline_mode<synchronous>, transform_indices = @transform_4, window_bounds = array<i64: 256, 1024>}, {transform_indices = @transform_5, window_bounds = array<i64: 1, 4, 1024>}]} {
    %c0 = arith.constant 0 : index
    %c0_0 = arith.constant 0 : index
    %c0_1 = arith.constant 0 : index
    %0 = vector.load %arg2[%c0, %c0_0, %c0_1] : memref<1x4x256xf32, #tpu.memory_space<vmem>>, vector<1x4x256xf32>
    %1 = vector.shape_cast %0 : vector<1x4x256xf32> to vector<4x256xf32>
    %2 = arith.truncf %1 : vector<4x256xf32> to vector<4x256xbf16>
    %c0_2 = arith.constant 0 : index
    %c0_3 = arith.constant 0 : index
    %3 = vector.load %arg4[%c0_2, %c0_3] : memref<2x4xbf16, #tpu.memory_space<vmem>>, vector<2x4xbf16>
    %cst = arith.constant dense<0.000000e+00> : vector<2x256xf32>
    %4 = tpu.matmul %3, %2, %cst {dimension_numbers = #tpu.dot_dimension_numbers<[1], [0], [0], [1], [0, 0, 1, 1], [], []>} : vector<2x4xbf16>, vector<4x256xbf16>, vector<2x256xf32> -> vector<2x256xf32>
    %5 = arith.truncf %4 : vector<2x256xf32> to vector<2x256xbf16>
    %c0_4 = arith.constant 0 : index
    %c0_5 = arith.constant 0 : index
    %6 = vector.load %arg6[%c0_4, %c0_5] : memref<256x1024xbf16, #tpu.memory_space<vmem>>, vector<256x1024xbf16>
    %cst_6 = arith.constant dense<0.000000e+00> : vector<2x1024xf32>
    %7 = tpu.matmul %5, %6, %cst_6 {dimension_numbers = #tpu.dot_dimension_numbers<[1], [0], [0], [1], [0, 0, 1, 1], [], []>} : vector<2x256xbf16>, vector<256x1024xbf16>, vector<2x1024xf32> -> vector<2x1024xf32>
    %c0_7 = arith.constant 0 : index
    %c0_8 = arith.constant 0 : index
    %8 = vector.load %arg5[%c0_7, %c0_8] : memref<2x1xf32, #tpu.memory_space<vmem>>, vector<2x1xf32>
    %9 = vector.broadcast %8 : vector<2x1xf32> to vector<2x1024xf32>
    %10 = arith.addf %7, %9 : vector<2x1024xf32>
    %c0_9 = arith.constant 0 : index
    %c0_10 = arith.constant 0 : index
    %c0_11 = arith.constant 0 : index
    %11 = vector.load %arg7[%c0_9, %c0_10, %c0_11] : memref<1x4x1024xf32, #tpu.memory_space<vmem>>, vector<1x2x1024xf32>
    %12 = vector.shape_cast %11 : vector<1x2x1024xf32> to vector<2x1024xf32>
    %13 = vector.shape_cast %10 : vector<2x1024xf32> to vector<1x2x1024xf32>
    tpu.vector_store %arg7[%c0_9, %c0_10, %c0_11], %13 {strides = array<i32>} : memref<1x4x1024xf32, #tpu.memory_space<vmem>>, vector<1x2x1024xf32>,
    %c0_12 = arith.constant 0 : index
    %c0_13 = arith.constant 0 : index
    %c0_14 = arith.constant 0 : index
    %14 = vector.load %arg3[%c0_12, %c0_13, %c0_14] : memref<1x2x1024xf32, #tpu.memory_space<vmem>>, vector<1x2x1024xf32>
    %15 = vector.shape_cast %14 : vector<1x2x1024xf32> to vector<2x1024xf32>
    %c0_15 = arith.constant 0 : index
    %c2 = arith.constant 2 : index
    %c0_16 = arith.constant 0 : index
    %16 = vector.load %arg7[%c0_15, %c2, %c0_16] : memref<1x4x1024xf32, #tpu.memory_space<vmem>>, vector<1x2x1024xf32>
    %17 = vector.shape_cast %16 : vector<1x2x1024xf32> to vector<2x1024xf32>
    %18 = vector.shape_cast %15 : vector<2x1024xf32> to vector<1x2x1024xf32>
    tpu.vector_store %arg7[%c0_15, %c2, %c0_16], %18 {strides = array<i32>} : memref<1x4x1024xf32, #tpu.memory_space<vmem>>, vector<1x2x1024xf32>,
    return
  }
  func.func @transform_0(%arg0: i32, %arg1: i32) -> (i32, i32, i32) {
    %c0_i32 = arith.constant 0 : i32
    %c0_i32_0 = arith.constant 0 : i32
    return %arg0, %c0_i32, %arg1 : i32, i32, i32
  }
  func.func @transform_1(%arg0: i32, %arg1: i32) -> (i32, i32, i32) {
    %c0_i32 = arith.constant 0 : i32
    %c0_i32_0 = arith.constant 0 : i32
    return %arg0, %c0_i32, %arg1 : i32, i32, i32
  }
  func.func @transform_2(%arg0: i32, %arg1: i32) -> (i32, i32) {
    %c0_i32 = arith.constant 0 : i32
    %c0_i32_0 = arith.constant 0 : i32
    %c0_i32_1 = arith.constant 0 : i32
    return %c0_i32, %c0_i32_0 : i32, i32
  }
  func.func @transform_3(%arg0: i32, %arg1: i32) -> (i32, i32) {
    %c0_i32 = arith.constant 0 : i32
    %c0_i32_0 = arith.constant 0 : i32
    %c0_i32_1 = arith.constant 0 : i32
    return %c0_i32, %c0_i32_0 : i32, i32
  }
  func.func @transform_4(%arg0: i32, %arg1: i32) -> (i32, i32) {
    %c0_i32 = arith.constant 0 : i32
    %c0_i32_0 = arith.constant 0 : i32
    %c0_i32_1 = arith.constant 0 : i32
    return %c0_i32, %c0_i32_0 : i32, i32
  }
  func.func @transform_5(%arg0: i32, %arg1: i32) -> (i32, i32, i32) {
    %c0_i32 = arith.constant 0 : i32
    %c0_i32_0 = arith.constant 0 : i32
    return %arg0, %c0_i32, %arg1 : i32, i32, i32
  }
}

</mosaic_0001>

<llo_original>
// kernel: upsample_concat_pallas.1
$region0: #{upsample_concat_pallas.1}
  #allocation0 [shape = 'u32[]', space=smem, size = 0x4, offset = 0x4, fixed_abs, tag = 'smem constant byte address 0x4 - core index']
  #allocation1 [shape = 'u32[144,128]{1,0:T(1,128)}', space=vmem, size = 0x12000, scoped, tag = 'internal scratch']
  %s0 = inlined_call_operand.vmem [shape: f32[2,4,256], index: 0, kind: input, shape index: {}]
  %s1 = inlined_call_operand.vmem [shape: f32[2,2,1024], index: 1, kind: input, shape index: {}]
  %s2 = inlined_call_operand.vmem [shape: bf16[2,4], index: 2, kind: input, shape index: {}]
  %s3 = inlined_call_operand.vmem [shape: f32[2,1], index: 3, kind: input, shape index: {}]
  %s4 = inlined_call_operand.vmem [shape: bf16[256,1024], index: 4, kind: input, shape index: {}]
  %s5 = inlined_call_operand.vmem [shape: f32[2,4,1024], index: 5, kind: output, shape index: {}]
  %s6 = sld [smem:[#allocation0]]
  $region53: #{upsample_concat_pallas.1} parent=0
    _
  %s8 = ssub.s32 1, %s6
  %s9 = scalar_select 0, %s8, %s6
  loop: start=0, step=1, limit=4
  $region2: #{upsample_concat_pallas.1} parent=0 // loop_pre_header
    _
  $region3: #{upsample_concat_pallas.1} parent=0 // loop_header
    %s11 = sphi 0, %s15
    %p12 = scmp.ge.s32.totalorder %s11, 4
    %s18 = sphi 0, %s30
    %s19 = sphi 0, %s26
    %s20 = sphi 0, %s18
    %s21 = sphi 0, %s19
    %s22 = sphi 0, %s20
    %s23 = sphi 0, %s21
    %s35 = sphi 0, %s37
    %s38 = sphi 0, %s35
    %s39 = sphi 0, %s38
    %s55 = sphi 0, %s39
    %s63 = sphi 0, %s65
    %s66 = sphi 0, %s63
    %s67 = sphi 0, %s66
    %s83 = sphi 0, %s67
    %s87 = sphi 0, %s87
    %s89 = sphi 0, %s87
    %s90 = sphi 0, %s89
    %s104 = sphi 0, %s90
    %s108 = sphi 0, %s108
    %s110 = sphi 0, %s108
    %s111 = sphi 0, %s110
    %s125 = sphi 0, %s111
    %s129 = sphi 0, %s129
    %s131 = sphi 0, %s129
    %s132 = sphi 0, %s131
    %s146 = sphi 0, %s132
    %s154 = sphi 0, %s156
    %s157 = sphi 0, %s154
    %s158 = sphi 0, %s157
    %s174 = sphi 0, %s158
  $region4: #{upsample_concat_pallas.1} parent=0 // loop_header_branch
    %14 = sbr.rel (%p12) target = $region8
  $region5: #{upsample_concat_pallas.1} parent=0 // loop_body
    %s16 = ssub.s32 %s11, 1
    %s17 = ssub.s32 %s11, 2
    %s24 = sadd.s32 1, %s19
    %p25 = scmp.ge.s32.totalorder %s24, 1
    %s26 = scalar_select %p25, 0, %s24
    %s27 = sadd.s32 1, %s18
    %s28 = scalar_select %p25, %s27, %s18
    %p29 = scmp.ge.s32.totalorder %s28, 2
    %s30 = scalar_select %p29, 0, %s28
    %s31 = ssub.s32 %s18, %s30
    %s32 = ssub.s32 %s19, %s26
    %s33 = sor.u32 %s31, %s32
    %p34 = scmp.eq.s32.totalorder %s33, 0
    %s36 = sadd.s32 %s35, 1
    %s37 = scalar_select %p34, %s35, %s36
    %p40 = pneg %p34
    %p41 = scmp.eq.s32.totalorder %s11, 1
    %p42 = por %p40, %p41
    %p43 = scmp.ne.s32.totalorder %s35, %s38
    %p44 = scmp.eq.s32.totalorder %s11, 0
    %p45 = por %p43, %p44
    %p46 = scmp.ne.s32.totalorder %s35, %s38
    %p47 = scmp.eq.s32.totalorder %s16, 1
    %p48 = por %p46, %p47
    %p49 = scmp.ne.s32.totalorder %s38, %s39
    %p50 = scmp.eq.s32.totalorder %s16, 0
    %p51 = por %p49, %p50
    %p52 = scmp.ne.s32.totalorder %s38, %s39
    %p53 = scmp.eq.s32.totalorder %s17, 1
    %p54 = por %p52, %p53
    %p56 = scmp.ne.s32.totalorder %s39, %s55
    %p57 = scmp.eq.s32.totalorder %s17, 0
    %p58 = por %p56, %p57
    %s59 = ssub.s32 %s18, %s30
    %s60 = ssub.s32 %s19, %s26
    %s61 = sor.u32 %s59, %s60
    %p62 = scmp.eq.s32.totalorder %s61, 0
    %s64 = sadd.s32 %s63, 1
    %s65 = scalar_select %p62, %s63, %s64
    %p68 = pneg %p62
    %p69 = scmp.eq.s32.totalorder %s11, 1
    %p70 = por %p68, %p69
    %p71 = scmp.ne.s32.totalorder %s63, %s66
    %p72 = scmp.eq.s32.totalorder %s11, 0
    %p73 = por %p71, %p72
    %p74 = scmp.ne.s32.totalorder %s63, %s66
    %p75 = scmp.eq.s32.totalorder %s16, 1
    %p76 = por %p74, %p75
    %p77 = scmp.ne.s32.totalorder %s66, %s67
    %p78 = scmp.eq.s32.totalorder %s16, 0
    %p79 = por %p77, %p78
    %p80 = scmp.ne.s32.totalorder %s66, %s67
    %p81 = scmp.eq.s32.totalorder %s17, 1
    %p82 = por %p80, %p81
    %p84 = scmp.ne.s32.totalorder %s67, %s83
    %p85 = scmp.eq.s32.totalorder %s17, 0
    %p86 = por %p84, %p85
    %s88 = sadd.s32 %s87, 1
    %p91 = scmp.eq.s32.totalorder %s11, 1
    %p92 = scmp.ne.s32.totalorder %s87, %s89
    %p93 = scmp.eq.s32.totalorder %s11, 0
    %p94 = por %p92, %p93
    %p95 = scmp.ne.s32.totalorder %s87, %s89
    %p96 = scmp.eq.s32.totalorder %s16, 1
    %p97 = por %p95, %p96
    %p98 = scmp.ne.s32.totalorder %s89, %s90
    %p99 = scmp.eq.s32.totalorder %s16, 0
    %p100 = por %p98, %p99
    %p101 = scmp.ne.s32.totalorder %s89, %s90
    %p102 = scmp.eq.s32.totalorder %s17, 1
    %p103 = por %p101, %p102
    %p105 = scmp.ne.s32.totalorder %s90, %s104
    %p106 = scmp.eq.s32.totalorder %s17, 0
    %p107 = por %p105, %p106
    %s109 = sadd.s32 %s108, 1
    %p112 = scmp.eq.s32.totalorder %s11, 1
    %p113 = scmp.ne.s32.totalorder %s108, %s110
    %p114 = scmp.eq.s32.totalorder %s11, 0
    %p115 = por %p113, %p114
    %p116 = scmp.ne.s32.totalorder %s108, %s110
    %p117 = scmp.eq.s32.totalorder %s16, 1
    %p118 = por %p116, %p117
    %p119 = scmp.ne.s32.totalorder %s110, %s111
    %p120 = scmp.eq.s32.totalorder %s16, 0
    %p121 = por %p119, %p120
    %p122 = scmp.ne.s32.totalorder %s110, %s111
    %p123 = scmp.eq.s32.totalorder %s17, 1
    %p124 = por %p122, %p123
    %p126 = scmp.ne.s32.totalorder %s111, %s125
    %p127 = scmp.eq.s32.totalorder %s17, 0
    %p128 = por %p126, %p127
    %s130 = sadd.s32 %s129, 1
    %p133 = scmp.eq.s32.totalorder %s11, 1
    %p134 = scmp.ne.s32.totalorder %s129, %s131
    %p135 = scmp.eq.s32.totalorder %s11, 0
    %p136 = por %p134, %p135
    %p137 = scmp.ne.s32.totalorder %s129, %s131
    %p138 = scmp.eq.s32.totalorder %s16, 1
    %p139 = por %p137, %p138
    %p140 = scmp.ne.s32.totalorder %s131, %s132
    %p141 = scmp.eq.s32.totalorder %s16, 0
    %p142 = por %p140, %p141
    %p143 = scmp.ne.s32.totalorder %s131, %s132
    %p144 = scmp.eq.s32.totalorder %s17, 1
    %p145 = por %p143, %p144
    %p147 = scmp.ne.s32.totalorder %s132, %s146
    %p148 = scmp.eq.s32.totalorder %s17, 0
    %p149 = por %p147, %p148
    %s150 = ssub.s32 %s18, %s30
    %s151 = ssub.s32 %s19, %s26
    %s152 = sor.u32 %s150, %s151
    %p153 = scmp.eq.s32.totalorder %s152, 0
    %s155 = sadd.s32 %s154, 1
    %s156 = scalar_select %p153, %s154, %s155
    %p159 = pneg %p153
    %p160 = scmp.eq.s32.totalorder %s11, 1
    %p161 = por %p159, %p160
    %p162 = scmp.ne.s32.totalorder %s154, %s157
    %p163 = scmp.eq.s32.totalorder %s11, 0
    %p164 = por %p162, %p163
    %p165 = scmp.ne.s32.totalorder %s154, %s157
    %p166 = scmp.eq.s32.totalorder %s16, 1
    %p167 = por %p165, %p166
    %p168 = scmp.ne.s32.totalorder %s157, %s158
    %p169 = scmp.eq.s32.totalorder %s16, 0
    %p170 = por %p168, %p169
    %p171 = scmp.ne.s32.totalorder %s157, %s158
    %p172 = scmp.eq.s32.totalorder %s17, 1
    %p173 = por %p171, %p172
    %p175 = scmp.ne.s32.totalorder %s158, %s174
    %p176 = scmp.eq.s32.totalorder %s17, 0
    %p177 = por %p175, %p176
    %p178 = scmp.le.s32.totalorder 1, %s11
    %p179 = scmp.lt.s32.totalorder %s11, 3
    %p180 = pnand %p178, %p179
    %p181 = pneg %p180
    // Predicated region
    $region9: #{upsample_concat_pallas.1} parent=5 // pred_check
      _
    $region10: #{upsample_concat_pallas.1} parent=5 // pred_check_branch
      %183 = sbr.rel (%p180) target = $region12
    $region11: #{upsample_concat_pallas.1} parent=5 // pred_region
      %s184 = ssub.s32 %s11, 1
      // Predicated region
      $region13: #{upsample_concat_pallas.1} parent=11 // pred_check
        %p185 = pneg %p100
      $region14: #{upsample_concat_pallas.1} parent=11 // pred_check_branch
        %187 = sbr.rel (%p185) target = $region16
      $region15: #{upsample_concat_pallas.1} parent=11 // pred_region
        _
      $region16: #{upsample_concat_pallas.1} parent=11 // pred_fallthru
        _
      // Predicated region
      $region17: #{upsample_concat_pallas.1} parent=11 // pred_check
        %p188 = pneg %p121
      $region18: #{upsample_concat_pallas.1} parent=11 // pred_check_branch
        %190 = sbr.rel (%p188) target = $region20
      $region19: #{upsample_concat_pallas.1} parent=11 // pred_region
        _
      $region20: #{upsample_concat_pallas.1} parent=11 // pred_fallthru
        _
      // Predicated region
      $region21: #{upsample_concat_pallas.1} parent=11 // pred_check
        %p191 = pneg %p142
      $region22: #{upsample_concat_pallas.1} parent=11 // pred_check_branch
        %193 = sbr.rel (%p191) target = $region24
      $region23: #{upsample_concat_pallas.1} parent=11 // pred_region
        _
      $region24: #{upsample_concat_pallas.1} parent=11 // pred_fallthru
        _
    $region12: #{upsample_concat_pallas.1} parent=5 // pred_fallthru
      _
    %p194 = scmp.lt.s32.totalorder %s11, 2
    // Predicated region
    $region25: #{upsample_concat_pallas.1} parent=5 // pred_check
      %p195 = pneg %p194
    $region26: #{upsample_concat_pallas.1} parent=5 // pred_check_branch
      %197 = sbr.rel (%p195) target = $region28
    $region27: #{upsample_concat_pallas.1} parent=5 // pred_region
      // Predicated region
      $region29: #{upsample_concat_pallas.1} parent=27 // pred_check
        %p198 = pneg %p45
      $region30: #{upsample_concat_pallas.1} parent=27 // pred_check_branch
        %200 = sbr.rel (%p198) target = $region32
      $region31: #{upsample_concat_pallas.1} parent=27 // pred_region
        %s201 = smul.u32 2, %s19
        %p202 = scmp.lt.s32.totalorder %s18, 1
        %s203 = scalar_select %p202, %s18, 1
        %p204 = scmp.lt.s32.totalorder %s201, 1
        %s205 = scalar_select %p204, %s201, 1
        %s206 = smul.addr %s203, 2
        %s207 = sadd.s32 %s205, %s206
        %s208 = smul.addr %s207, 4
        %s209 = scalar_lea.vmem %s0, %s208
        %s210 = smul.u32 2, %s19
      $region32: #{upsample_concat_pallas.1} parent=27 // pred_fallthru
        _
      // Predicated region
      $region33: #{upsample_concat_pallas.1} parent=27 // pred_check
        %p211 = pneg %p73
      $region34: #{upsample_concat_pallas.1} parent=27 // pred_check_branch
        %213 = sbr.rel (%p211) target = $region36
      $region35: #{upsample_concat_pallas.1} parent=27 // pred_region
        %s214 = smul.u32 8, %s19
        %p215 = scmp.lt.s32.totalorder %s18, 1
        %s216 = scalar_select %p215, %s18, 1
        %p217 = scmp.lt.s32.totalorder %s214, 7
        %s218 = scalar_select %p217, %s214, 7
        %s219 = smul.addr %s216, 8
        %s220 = sadd.s32 %s218, %s219
        %s221 = smul.addr %s220, 2
        %s222 = scalar_lea.vmem %s1, %s221
        %s223 = smul.u32 8, %s19
      $region36: #{upsample_concat_pallas.1} parent=27 // pred_fallthru
        _
    $region28: #{upsample_concat_pallas.1} parent=5 // pred_fallthru
      _
    %p224 = scmp.le.s32.totalorder 1, %s11
    %p225 = scmp.lt.s32.totalorder %s11, 3
    %p226 = pnand %p224, %p225
    %p227 = pneg %p226
    // Predicated region
    $region37: #{upsample_concat_pallas.1} parent=5 // pred_check
      _
    $region38: #{upsample_concat_pallas.1} parent=5 // pred_check_branch
      %229 = sbr.rel (%p226) target = $region40
    $region39: #{upsample_concat_pallas.1} parent=5 // pred_region
      %s230 = ssub.s32 %s11, 1
      %s231 = smul.u32 2, %s21
      %p232 = scmp.lt.s32.totalorder %s20, 1
      %s233 = scalar_select %p232, %s20, 1
      %p234 = scmp.lt.s32.totalorder %s231, 1
      %s235 = scalar_select %p234, %s231, 1
      %s236 = smul.addr %s233, 2
      %s237 = sadd.s32 %s235, %s236
      %s238 = smul.addr %s237, 4
      %s239 = scalar_lea.vmem %s0, %s238
      %p240 = pneg %p51
      %p241 = pneg %p48
      %s242 = smul.u32 8, %s21
      %p243 = scmp.lt.s32.totalorder %s20, 1
      %s244 = scalar_select %p243, %s20, 1
      %p245 = scmp.lt.s32.totalorder %s242, 7
      %s246 = scalar_select %p245, %s242, 7
      %s247 = smul.addr %s244, 8
      %s248 = sadd.s32 %s246, %s247
      %s249 = smul.addr %s248, 2
      %s250 = scalar_lea.vmem %s1, %s249
      %p251 = pneg %p79
      %p252 = pneg %p76
      %p253 = pneg %p100
      %p254 = pneg %p97
      %p255 = pneg %p121
      %p256 = pneg %p118
      %p257 = pneg %p142
      %p258 = pneg %p139
      %p259 = pneg %p170
      %p260 = pneg %p167
      %s261 = smul.u32 8, %s21
      %p262 = scmp.lt.s32.totalorder %s20, 1
      %s263 = scalar_select %p262, %s20, 1
      %p264 = scmp.lt.s32.totalorder %s261, 7
      %s265 = scalar_select %p264, %s261, 7
      %s266 = smul.addr %s263, 8
      %s267 = sadd.s32 %s265, %s266
      %s268 = smul.addr %s267, 4
      %s269 = scalar_lea.vmem %s5, %s268
      %s270 = smul.u32 2, %s21
      %p271 = scmp.lt.s32.totalorder %s20, 1
      %s272 = scalar_select %p271, %s20, 1
      %p273 = scmp.lt.s32.totalorder %s270, 1
      %s274 = scalar_select %p273, %s270, 1
      %s275 = smul.addr %s272, 2
      %s276 = sadd.s32 %s274, %s275
      %s277 = smul.addr %s276, 4
      %s278 = scalar_lea.vmem %s0, %s277
      %s279 = smul.u32 2, %s21
      %s280 = smul.u32 8, %s21
      %p281 = scmp.lt.s32.totalorder %s20, 1
      %s282 = scalar_select %p281, %s20, 1
      %p283 = scmp.lt.s32.totalorder %s280, 7
      %s284 = scalar_select %p283, %s280, 7
      %s285 = smul.addr %s282, 8
      %s286 = sadd.s32 %s284, %s285
      %s287 = smul.addr %s286, 2
      %s288 = scalar_lea.vmem %s1, %s287
      %s289 = smul.u32 8, %s21
      %s290 = smul.u32 8, %s21
      %p291 = scmp.lt.s32.totalorder %s20, 1
      %s292 = scalar_select %p291, %s20, 1
      %p293 = scmp.lt.s32.totalorder %s290, 7
      %s294 = scalar_select %p293, %s290, 7
      %s295 = smul.addr %s292, 8
      %s296 = sadd.s32 %s294, %s295
      %s297 = smul.addr %s296, 4
      %s298 = scalar_lea.vmem %s5, %s297
      %s299 = smul.u32 8, %s21
      %v301 = vld [vmem:[%s278] sm:$0xff]
      %v303 = vcombine.high %v301, %v301
      %v305 = vpack.c.bf16 %v301, %v301
      %v306 = vpack.c.bf16 %v303, %v303
      %v307 = vld [vmem:[%s2] sm:$0x1]
      %vm308 = vcmask 31744
      %v310 = vsel %vm308, %v307, 0
      %vm312 = vcmask 1041408
      %v314 = vsel %vm312, %v305, 0
      %v317 = vsel %vm312, %v306, 0
      %319 = vmatprep.subr.bf16.mxu0 %v317
      %320 = vmatpush1.bf16.msra.mxu0 %v314
      %321 = vmatprep.subr.bf16.mxu0 0
      %322 = vmatpush1.bf16.msra.mxu0 0
      %323 = vmatprep.subr.bf16.mxu0 0
      %324 = vmatpush1.bf16.msra.mxu0 0
      %325 = vmatprep.subr.bf16.mxu0 0
      %326 = vmatpush1.bf16.msra.mxu0 0
      %327 = vmatprep.subr.bf16.mxu0 0
      %328 = vmatpush1.bf16.msra.mxu0 0
      %329 = vmatprep.subr.bf16.mxu0 0
      %330 = vmatpush1.bf16.msra.mxu0 0
      %331 = vmatprep.subr.bf16.mxu0 0
      %332 = vmatpush1.bf16.msra.mxu0 0
      %333 = vmatprep.subr.bf16.mxu0 0
      %334 = vmatpush1.bf16.msra.mxu0 0
      %335 = vmatprep.subr.bf16.mxu0 0
      %336 = vmatpush1.bf16.msra.mxu0 0
      %337 = vmatprep.subr.bf16.mxu0 0
      %338 = vmatpush1.bf16.msra.mxu0 0
      %339 = vmatprep.subr.bf16.mxu0 0
      %340 = vmatpush1.bf16.msra.mxu0 0
      %341 = vmatprep.subr.bf16.mxu0 0
      %342 = vmatpush1.bf16.msra.mxu0 0
      %343 = vmatprep.subr.bf16.mxu0 0
      %344 = vmatpush1.bf16.msra.mxu0 0
      %345 = vmatprep.subr.bf16.mxu0 0
      %346 = vmatpush1.bf16.msra.mxu0 0
      %347 = vmatprep.subr.bf16.mxu0 0
      %348 = vmatpush1.bf16.msra.mxu0 0
      %349 = vmatprep.subr.bf16.mxu0 0
      %350 = vmatpush1.bf16.msra.mxu0 0
      %351 = vmatprep.mubr.bf16.mxu0 0
      %352 = vmatmul.mubr.bf16.gmra.mrb[0].mxu0 %v310
      %v353 = vpop.f32.mrb[0].mxu0
      %v354 = vadd.f32 0.0, %v353
      %v355 = vpop.f32.mrb[0].mxu0
      %v356 = vadd.f32 0.0, %v355
      %v357 = vpop.f32.mrb[0].mxu0
      %v358 = vpop.f32.mrb[0].mxu0
      %359 = vdwg.mxu0
      %v360 = vpack.c.bf16 %v354, %v354
      %v361 = vpack.c.bf16 %v356, %v356
      %v362 = vld [vmem:[%s4] sm:$0xff]
      %v363 = vld [vmem:[%s4 + $0x8] sm:$0xff]
      %v364 = vld [vmem:[%s4 + $0x10] sm:$0xff]
      %v365 = vld [vmem:[%s4 + $0x18] sm:$0xff]
      %v366 = vld [vmem:[%s4 + $0x20] sm:$0xff]
      %v367 = vld [vmem:[%s4 + $0x28] sm:$0xff]
      %v368 = vld [vmem:[%s4 + $0x30] sm:$0xff]
      %v369 = vld [vmem:[%s4 + $0x38] sm:$0xff]
      %v370 = vld [vmem:[%s4 + $0x40] sm:$0xff]
      %v371 = vld [vmem:[%s4 + $0x48] sm:$0xff]
      %v372 = vld [vmem:[%s4 + $0x50] sm:$0xff]
      %v373 = vld [vmem:[%s4 + $0x58] sm:$0xff]
      %v374 = vld [vmem:[%s4 + $0x60] sm:$0xff]
      %v375 = vld [vmem:[%s4 + $0x68] sm:$0xff]
      %v376 = vld [vmem:[%s4 + $0x70] sm:$0xff]
      %v377 = vld [vmem:[%s4 + $0x78] sm:$0xff]
      %v378 = vld [vmem:[%s4 + $0x80] sm:$0xff]
      %v379 = vld [vmem:[%s4 + $0x88] sm:$0xff]
      %v380 = vld [vmem:[%s4 + $0x90] sm:$0xff]
      %v381 = vld [vmem:[%s4 + $0x98] sm:$0xff]
      %v382 = vld [vmem:[%s4 + $0xa0] sm:$0xff]
      %v383 = vld [vmem:[%s4 + $0xa8] sm:$0xff]
      %v384 = vld [vmem:[%s4 + $0xb0] sm:$0xff]
      %v385 = vld [vmem:[%s4 + $0xb8] sm:$0xff]
      %v386 = vld [vmem:[%s4 + $0xc0] sm:$0xff]
      %v387 = vld [vmem:[%s4 + $0xc8] sm:$0xff]
      %v388 = vld [vmem:[%s4 + $0xd0] sm:$0xff]
      %v389 = vld [vmem:[%s4 + $0xd8] sm:$0xff]
      %v390 = vld [vmem:[%s4 + $0xe0] sm:$0xff]
      %v391 = vld [vmem:[%s4 + $0xe8] sm:$0xff]
      %v392 = vld [vmem:[%s4 + $0xf0] sm:$0xff]
      %v393 = vld [vmem:[%s4 + $0xf8] sm:$0xff]
      %v394 = vld [vmem:[%s4 + $0x100] sm:$0xff]
      %v395 = vld [vmem:[%s4 + $0x108] sm:$0xff]
      %v396 = vld [vmem:[%s4 + $0x110] sm:$0xff]
      %v397 = vld [vmem:[%s4 + $0x118] sm:$0xff]
      %v398 = vld [vmem:[%s4 + $0x120] sm:$0xff]
      %v399 = vld [vmem:[%s4 + $0x128] sm:$0xff]
      %v400 = vld [vmem:[%s4 + $0x130] sm:$0xff]
      %v401 = vld [vmem:[%s4 + $0x138] sm:$0xff]
      %v402 = vld [vmem:[%s4 + $0x140] sm:$0xff]
      %v403 = vld [vmem:[%s4 + $0x148] sm:$0xff]
      %v404 = vld [vmem:[%s4 + $0x150] sm:$0xff]
      %v405 = vld [vmem:[%s4 + $0x158] sm:$0xff]
      %v406 = vld [vmem:[%s4 + $0x160] sm:$0xff]
      %v407 = vld [vmem:[%s4 + $0x168] sm:$0xff]
      %v408 = vld [vmem:[%s4 + $0x170] sm:$0xff]
      %v409 = vld [vmem:[%s4 + $0x178] sm:$0xff]
      %v410 = vld [vmem:[%s4 + $0x180] sm:$0xff]
      %v411 = vld [vmem:[%s4 + $0x188] sm:$0xff]
      %v412 = vld [vmem:[%s4 + $0x190] sm:$0xff]
      %v413 = vld [vmem:[%s4 + $0x198] sm:$0xff]
      %v414 = vld [vmem:[%s4 + $0x1a0] sm:$0xff]
      %v415 = vld [vmem:[%s4 + $0x1a8] sm:$0xff]
      %v416 = vld [vmem:[%s4 + $0x1b0] sm:$0xff]
      %v417 = vld [vmem:[%s4 + $0x1b8] sm:$0xff]
      %v418 = vld [vmem:[%s4 + $0x1c0] sm:$0xff]
      %v419 = vld [vmem:[%s4 + $0x1c8] sm:$0xff]
      %v420 = vld [vmem:[%s4 + $0x1d0] sm:$0xff]
      %v421 = vld [vmem:[%s4 + $0x1d8] sm:$0xff]
      %v422 = vld [vmem:[%s4 + $0x1e0] sm:$0xff]
      %v423 = vld [vmem:[%s4 + $0x1e8] sm:$0xff]
      %v424 = vld [vmem:[%s4 + $0x1f0] sm:$0xff]
      %v425 = vld [vmem:[%s4 + $0x1f8] sm:$0xff]
      %v426 = vld [vmem:[%s4 + $0x200] sm:$0xff]
      %v427 = vld [vmem:[%s4 + $0x208] sm:$0xff]
      %v428 = vld [vmem:[%s4 + $0x210] sm:$0xff]
      %v429 = vld [vmem:[%s4 + $0x218] sm:$0xff]
      %v430 = vld [vmem:[%s4 + $0x220] sm:$0xff]
      %v431 = vld [vmem:[%s4 + $0x228] sm:$0xff]
      %v432 = vld [vmem:[%s4 + $0x230] sm:$0xff]
      %v433 = vld [vmem:[%s4 + $0x238] sm:$0xff]
      %v434 = vld [vmem:[%s4 + $0x240] sm:$0xff]
      %v435 = vld [vmem:[%s4 + $0x248] sm:$0xff]
      %v436 = vld [vmem:[%s4 + $0x250] sm:$0xff]
      %v437 = vld [vmem:[%s4 + $0x258] sm:$0xff]
      %v438 = vld [vmem:[%s4 + $0x260] sm:$0xff]
      %v439 = vld [vmem:[%s4 + $0x268] sm:$0xff]
      %v440 = vld [vmem:[%s4 + $0x270] sm:$0xff]
      %v441 = vld [vmem:[%s4 + $0x278] sm:$0xff]
      %v442 = vld [vmem:[%s4 + $0x280] sm:$0xff]
      %v443 = vld [vmem:[%s4 + $0x288] sm:$0xff]
      %v444 = vld [vmem:[%s4 + $0x290] sm:$0xff]
      %v445 = vld [vmem:[%s4 + $0x298] sm:$0xff]
      %v446 = vld [vmem:[%s4 + $0x2a0] sm:$0xff]
      %v447 = vld [vmem:[%s4 + $0x2a8] sm:$0xff]
      %v448 = vld [vmem:[%s4 + $0x2b0] sm:$0xff]
      %v449 = vld [vmem:[%s4 + $0x2b8] sm:$0xff]
      %v450 = vld [vmem:[%s4 + $0x2c0] sm:$0xff]
      %v451 = vld [vmem:[%s4 + $0x2c8] sm:$0xff]
      %v452 = vld [vmem:[%s4 + $0x2d0] sm:$0xff]
      %v453 = vld [vmem:[%s4 + $0x2d8] sm:$0xff]
      %v454 = vld [vmem:[%s4 + $0x2e0] sm:$0xff]
      %v455 = vld [vmem:[%s4 + $0x2e8] sm:$0xff]
      %v456 = vld [vmem:[%s4 + $0x2f0] sm:$0xff]
      %v457 = vld [vmem:[%s4 + $0x2f8] sm:$0xff]
      %v458 = vld [vmem:[%s4 + $0x300] sm:$0xff]
      %v459 = vld [vmem:[%s4 + $0x308] sm:$0xff]
      %v460 = vld [vmem:[%s4 + $0x310] sm:$0xff]
      %v461 = vld [vmem:[%s4 + $0x318] sm:$0xff]
      %v462 = vld [vmem:[%s4 + $0x320] sm:$0xff]
      %v463 = vld [vmem:[%s4 + $0x328] sm:$0xff]
      %v464 = vld [vmem:[%s4 + $0x330] sm:$0xff]
      %v465 = vld [vmem:[%s4 + $0x338] sm:$0xff]
      %v466 = vld [vmem:[%s4 + $0x340] sm:$0xff]
      %v467 = vld [vmem:[%s4 + $0x348] sm:$0xff]
      %v468 = vld [vmem:[%s4 + $0x350] sm:$0xff]
      %v469 = vld [vmem:[%s4 + $0x358] sm:$0xff]
      %v470 = vld [vmem:[%s4 + $0x360] sm:$0xff]
      %v471 = vld [vmem:[%s4 + $0x368] sm:$0xff]
      %v472 = vld [vmem:[%s4 + $0x370] sm:$0xff]
      %v473 = vld [vmem:[%s4 + $0x378] sm:$0xff]
      %v474 = vld [vmem:[%s4 + $0x380] sm:$0xff]
      %v475 = vld [vmem:[%s4 + $0x388] sm:$0xff]
      %v476 = vld [vmem:[%s4 + $0x390] sm:$0xff]
      %v477 = vld [vmem:[%s4 + $0x398] sm:$0xff]
      %v478 = vld [vmem:[%s4 + $0x3a0] sm:$0xff]
      %v479 = vld [vmem:[%s4 + $0x3a8] sm:$0xff]
      %v480 = vld [vmem:[%s4 + $0x3b0] sm:$0xff]
      %v481 = vld [vmem:[%s4 + $0x3b8] sm:$0xff]
      %v482 = vld [vmem:[%s4 + $0x3c0] sm:$0xff]
      %v483 = vld [vmem:[%s4 + $0x3c8] sm:$0xff]
      %v484 = vld [vmem:[%s4 + $0x3d0] sm:$0xff]
      %v485 = vld [vmem:[%s4 + $0x3d8] sm:$0xff]
      %v486 = vld [vmem:[%s4 + $0x3e0] sm:$0xff]
      %v487 = vld [vmem:[%s4 + $0x3e8] sm:$0xff]
      %v488 = vld [vmem:[%s4 + $0x3f0] sm:$0xff]
      %v489 = vld [vmem:[%s4 + $0x3f8] sm:$0xff]
      %v490 = vld [vmem:[%s3] sm:$0x3]
      %492 = vset.pattern.permute.xlu0 0
      %493 = vperm.xlu0 %492, %v490
      %v494 = vpop.permute.xlu0 %493
      %v624 = vunpack.c.l.b16 %v362
      %v625 = vunpack.c.h.b16 %v362
      %v626 = vunpack.c.l.b16 %v363
      %v627 = vunpack.c.h.b16 %v363
      %v628 = vunpack.c.l.b16 %v364
      %v629 = vunpack.c.h.b16 %v364
      %v630 = vunpack.c.l.b16 %v365
      %v631 = vunpack.c.h.b16 %v365
      %v632 = vunpack.c.l.b16 %v366
      %v633 = vunpack.c.h.b16 %v366
      %v634 = vunpack.c.l.b16 %v367
      %v635 = vunpack.c.h.b16 %v367
      %v636 = vunpack.c.l.b16 %v368
      %v637 = vunpack.c.h.b16 %v368
      %v638 = vunpack.c.l.b16 %v369
      %v639 = vunpack.c.h.b16 %v369
      %v640 = vunpack.c.l.b16 %v370
      %v641 = vunpack.c.h.b16 %v370
      %v642 = vunpack.c.l.b16 %v371
      %v643 = vunpack.c.h.b16 %v371
      %v644 = vunpack.c.l.b16 %v372
      %v645 = vunpack.c.h.b16 %v372
      %v646 = vunpack.c.l.b16 %v373
      %v647 = vunpack.c.h.b16 %v373
      %v648 = vunpack.c.l.b16 %v374
      %v649 = vunpack.c.h.b16 %v374
      %v650 = vunpack.c.l.b16 %v375
      %v651 = vunpack.c.h.b16 %v375
      %v652 = vunpack.c.l.b16 %v376
      %v653 = vunpack.c.h.b16 %v376
      %v654 = vunpack.c.l.b16 %v377
      %v655 = vunpack.c.h.b16 %v377
      %v656 = vunpack.c.l.b16 %v378
      %v657 = vunpack.c.h.b16 %v378
      %v658 = vunpack.c.l.b16 %v379
      %v659 = vunpack.c.h.b16 %v379
      %v660 = vunpack.c.l.b16 %v380
      %v661 = vunpack.c.h.b16 %v380
      %v662 = vunpack.c.l.b16 %v381
      %v663 = vunpack.c.h.b16 %v381
      %v664 = vunpack.c.l.b16 %v382
      %v665 = vunpack.c.h.b16 %v382
      %v666 = vunpack.c.l.b16 %v383
      %v667 = vunpack.c.h.b16 %v383
      %v668 = vunpack.c.l.b16 %v384
      %v669 = vunpack.c.h.b16 %v384
      %v670 = vunpack.c.l.b16 %v385
      %v671 = vunpack.c.h.b16 %v385
      %v672 = vunpack.c.l.b16 %v386
      %v673 = vunpack.c.h.b16 %v386
      %v674 = vunpack.c.l.b16 %v387
      %v675 = vunpack.c.h.b16 %v387
      %v676 = vunpack.c.l.b16 %v388
      %v677 = vunpack.c.h.b16 %v388
      %v678 = vunpack.c.l.b16 %v389
      %v679 = vunpack.c.h.b16 %v389
      %v680 = vunpack.c.l.b16 %v390
      %v681 = vunpack.c.h.b16 %v390
      %v682 = vunpack.c.l.b16 %v391
      %v683 = vunpack.c.h.b16 %v391
      %v684 = vunpack.c.l.b16 %v392
      %v685 = vunpack.c.h.b16 %v392
      %v686 = vunpack.c.l.b16 %v393
      %v687 = vunpack.c.h.b16 %v393
      %v688 = vunpack.c.l.b16 %v394
      %v689 = vunpack.c.h.b16 %v394
      %v690 = vunpack.c.l.b16 %v395
      %v691 = vunpack.c.h.b16 %v395
      %v692 = vunpack.c.l.b16 %v396
      %v693 = vunpack.c.h.b16 %v396
      %v694 = vunpack.c.l.b16 %v397
      %v695 = vunpack.c.h.b16 %v397
      %v696 = vunpack.c.l.b16 %v398
      %v697 = vunpack.c.h.b16 %v398
      %v698 = vunpack.c.l.b16 %v399
      %v699 = vunpack.c.h.b16 %v399
      %v700 = vunpack.c.l.b16 %v400
      %v701 = vunpack.c.h.b16 %v400
      %v702 = vunpack.c.l.b16 %v401
      %v703 = vunpack.c.h.b16 %v401
      %v704 = vunpack.c.l.b16 %v402
      %v705 = vunpack.c.h.b16 %v402
      %v706 = vunpack.c.l.b16 %v403
      %v707 = vunpack.c.h.b16 %v403
      %v708 = vunpack.c.l.b16 %v404
      %v709 = vunpack.c.h.b16 %v404
      %v710 = vunpack.c.l.b16 %v405
      %v711 = vunpack.c.h.b16 %v405
      %v712 = vunpack.c.l.b16 %v406
      %v713 = vunpack.c.h.b16 %v406
      %v714 = vunpack.c.l.b16 %v407
      %v715 = vunpack.c.h.b16 %v407
      %v716 = vunpack.c.l.b16 %v408
      %v717 = vunpack.c.h.b16 %v408
      %v718 = vunpack.c.l.b16 %v409
      %v719 = vunpack.c.h.b16 %v409
      %v720 = vunpack.c.l.b16 %v410
      %v721 = vunpack.c.h.b16 %v410
      %v722 = vunpack.c.l.b16 %v411
      %v723 = vunpack.c.h.b16 %v411
      %v724 = vunpack.c.l.b16 %v412
      %v725 = vunpack.c.h.b16 %v412
      %v726 = vunpack.c.l.b16 %v413
      %v727 = vunpack.c.h.b16 %v413
      %v728 = vunpack.c.l.b16 %v414
      %v729 = vunpack.c.h.b16 %v414
      %v730 = vunpack.c.l.b16 %v415
      %v731 = vunpack.c.h.b16 %v415
      %v732 = vunpack.c.l.b16 %v416
      %v733 = vunpack.c.h.b16 %v416
      %v734 = vunpack.c.l.b16 %v417
      %v735 = vunpack.c.h.b16 %v417
      %v736 = vunpack.c.l.b16 %v418
      %v737 = vunpack.c.h.b16 %v418
      %v738 = vunpack.c.l.b16 %v419
      %v739 = vunpack.c.h.b16 %v419
      %v740 = vunpack.c.l.b16 %v420
      %v741 = vunpack.c.h.b16 %v420
      %v742 = vunpack.c.l.b16 %v421
      %v743 = vunpack.c.h.b16 %v421
      %v744 = vunpack.c.l.b16 %v422
      %v745 = vunpack.c.h.b16 %v422
      %v746 = vunpack.c.l.b16 %v423
      %v747 = vunpack.c.h.b16 %v423
      %v748 = vunpack.c.l.b16 %v424
      %v749 = vunpack.c.h.b16 %v424
      %v750 = vunpack.c.l.b16 %v425
      %v751 = vunpack.c.h.b16 %v425
      %v752 = vunpack.c.l.b16 %v426
      %v753 = vunpack.c.h.b16 %v426
      %v754 = vunpack.c.l.b16 %v427
      %v755 = vunpack.c.h.b16 %v427
      %v756 = vunpack.c.l.b16 %v428
      %v757 = vunpack.c.h.b16 %v428
      %v758 = vunpack.c.l.b16 %v429
      %v759 = vunpack.c.h.b16 %v429
      %v760 = vunpack.c.l.b16 %v430
      %v761 = vunpack.c.h.b16 %v430
      %v762 = vunpack.c.l.b16 %v431
      %v763 = vunpack.c.h.b16 %v431
      %v764 = vunpack.c.l.b16 %v432
      %v765 = vunpack.c.h.b16 %v432
      %v766 = vunpack.c.l.b16 %v433
      %v767 = vunpack.c.h.b16 %v433
      %v768 = vunpack.c.l.b16 %v434
      %v769 = vunpack.c.h.b16 %v434
      %v770 = vunpack.c.l.b16 %v435
      %v771 = vunpack.c.h.b16 %v435
      %v772 = vunpack.c.l.b16 %v436
      %v773 = vunpack.c.h.b16 %v436
      %v774 = vunpack.c.l.b16 %v437
      %v775 = vunpack.c.h.b16 %v437
      %v776 = vunpack.c.l.b16 %v438
      %v777 = vunpack.c.h.b16 %v438
      %v778 = vunpack.c.l.b16 %v439
      %v779 = vunpack.c.h.b16 %v439
      %v780 = vunpack.c.l.b16 %v440
      %v781 = vunpack.c.h.b16 %v440
      %v782 = vunpack.c.l.b16 %v441
      %v783 = vunpack.c.h.b16 %v441
      %v784 = vunpack.c.l.b16 %v442
      %v785 = vunpack.c.h.b16 %v442
      %v786 = vunpack.c.l.b16 %v443
      %v787 = vunpack.c.h.b16 %v443
      %v788 = vunpack.c.l.b16 %v444
      %v789 = vunpack.c.h.b16 %v444
      %v790 = vunpack.c.l.b16 %v445
      %v791 = vunpack.c.h.b16 %v445
      %v792 = vunpack.c.l.b16 %v446
      %v793 = vunpack.c.h.b16 %v446
      %v794 = vunpack.c.l.b16 %v447
      %v795 = vunpack.c.h.b16 %v447
      %v796 = vunpack.c.l.b16 %v448
      %v797 = vunpack.c.h.b16 %v448
      %v798 = vunpack.c.l.b16 %v449
      %v799 = vunpack.c.h.b16 %v449
      %v800 = vunpack.c.l.b16 %v450
      %v801 = vunpack.c.h.b16 %v450
      %v802 = vunpack.c.l.b16 %v451
      %v803 = vunpack.c.h.b16 %v451
      %v804 = vunpack.c.l.b16 %v452
      %v805 = vunpack.c.h.b16 %v452
      %v806 = vunpack.c.l.b16 %v453
      %v807 = vunpack.c.h.b16 %v453
      %v808 = vunpack.c.l.b16 %v454
      %v809 = vunpack.c.h.b16 %v454
      %v810 = vunpack.c.l.b16 %v455
      %v811 = vunpack.c.h.b16 %v455
      %v812 = vunpack.c.l.b16 %v456
      %v813 = vunpack.c.h.b16 %v456
      %v814 = vunpack.c.l.b16 %v457
      %v815 = vunpack.c.h.b16 %v457
      %v816 = vunpack.c.l.b16 %v458
      %v817 = vunpack.c.h.b16 %v458
      %v818 = vunpack.c.l.b16 %v459
      %v819 = vunpack.c.h.b16 %v459
      %v820 = vunpack.c.l.b16 %v460
      %v821 = vunpack.c.h.b16 %v460
      %v822 = vunpack.c.l.b16 %v461
      %v823 = vunpack.c.h.b16 %v461
      %v824 = vunpack.c.l.b16 %v462
      %v825 = vunpack.c.h.b16 %v462
      %v826 = vunpack.c.l.b16 %v463
      %v827 = vunpack.c.h.b16 %v463
      %v828 = vunpack.c.l.b16 %v464
      %v829 = vunpack.c.h.b16 %v464
      %v830 = vunpack.c.l.b16 %v465
      %v831 = vunpack.c.h.b16 %v465
      %v832 = vunpack.c.l.b16 %v466
      %v833 = vunpack.c.h.b16 %v466
      %v834 = vunpack.c.l.b16 %v467
      %v835 = vunpack.c.h.b16 %v467
      %v836 = vunpack.c.l.b16 %v468
      %v837 = vunpack.c.h.b16 %v468
      %v838 = vunpack.c.l.b16 %v469
      %v839 = vunpack.c.h.b16 %v469
      %v840 = vunpack.c.l.b16 %v470
      %v841 = vunpack.c.h.b16 %v470
      %v842 = vunpack.c.l.b16 %v471
      %v843 = vunpack.c.h.b16 %v471
      %v844 = vunpack.c.l.b16 %v472
      %v845 = vunpack.c.h.b16 %v472
      %v846 = vunpack.c.l.b16 %v473
      %v847 = vunpack.c.h.b16 %v473
      %v848 = vunpack.c.l.b16 %v474
      %v849 = vunpack.c.h.b16 %v474
      %v850 = vunpack.c.l.b16 %v475
      %v851 = vunpack.c.h.b16 %v475
      %v852 = vunpack.c.l.b16 %v476
      %v853 = vunpack.c.h.b16 %v476
      %v854 = vunpack.c.l.b16 %v477
      %v855 = vunpack.c.h.b16 %v477
      %v856 = vunpack.c.l.b16 %v478
      %v857 = vunpack.c.h.b16 %v478
      %v858 = vunpack.c.l.b16 %v479
      %v859 = vunpack.c.h.b16 %v479
      %v860 = vunpack.c.l.b16 %v480
      %v861 = vunpack.c.h.b16 %v480
      %v862 = vunpack.c.l.b16 %v481
      %v863 = vunpack.c.h.b16 %v481
      %v864 = vunpack.c.l.b16 %v482
      %v865 = vunpack.c.h.b16 %v482
      %v866 = vunpack.c.l.b16 %v483
      %v867 = vunpack.c.h.b16 %v483
      %v868 = vunpack.c.l.b16 %v484
      %v869 = vunpack.c.h.b16 %v484
      %v870 = vunpack.c.l.b16 %v485
      %v871 = vunpack.c.h.b16 %v485
      %v872 = vunpack.c.l.b16 %v486
      %v873 = vunpack.c.h.b16 %v486
      %v874 = vunpack.c.l.b16 %v487
      %v875 = vunpack.c.h.b16 %v487
      %v876 = vunpack.c.l.b16 %v488
      %v877 = vunpack.c.h.b16 %v488
      %v878 = vunpack.c.l.b16 %v489
      %v879 = vunpack.c.h.b16 %v489
      %v880 = vpack.c.b16 %v632, %v624
      %v881 = vpack.c.b16 %v633, %v625
      %v882 = vpack.c.b16 %v634, %v626
      %v883 = vpack.c.b16 %v635, %v627
      %v884 = vpack.c.b16 %v636, %v628
      %v885 = vpack.c.b16 %v637, %v629
      %v886 = vpack.c.b16 %v638, %v630
      %v887 = vpack.c.b16 %v639, %v631
      %v888 = vpack.c.b16 %v648, %v640
      %v889 = vpack.c.b16 %v649, %v641
      %v890 = vpack.c.b16 %v650, %v642
      %v891 = vpack.c.b16 %v651, %v643
      %v892 = vpack.c.b16 %v652, %v644
      %v893 = vpack.c.b16 %v653, %v645
      %v894 = vpack.c.b16 %v654, %v646
      %v895 = vpack.c.b16 %v655, %v647
      %v896 = vpack.c.b16 %v664, %v656
      %v897 = vpack.c.b16 %v665, %v657
      %v898 = vpack.c.b16 %v666, %v658
      %v899 = vpack.c.b16 %v667, %v659
      %v900 = vpack.c.b16 %v668, %v660
      %v901 = vpack.c.b16 %v669, %v661
      %v902 = vpack.c.b16 %v670, %v662
      %v903 = vpack.c.b16 %v671, %v663
      %v904 = vpack.c.b16 %v680, %v672
      %v905 = vpack.c.b16 %v681, %v673
      %v906 = vpack.c.b16 %v682, %v674
      %v907 = vpack.c.b16 %v683, %v675
      %v908 = vpack.c.b16 %v684, %v676
      %v909 = vpack.c.b16 %v685, %v677
      %v910 = vpack.c.b16 %v686, %v678
      %v911 = vpack.c.b16 %v687, %v679
      %v912 = vpack.c.b16 %v696, %v688
      %v913 = vpack.c.b16 %v697, %v689
      %v914 = vpack.c.b16 %v698, %v690
      %v915 = vpack.c.b16 %v699, %v691
      %v916 = vpack.c.b16 %v700, %v692
      %v917 = vpack.c.b16 %v701, %v693
      %v918 = vpack.c.b16 %v702, %v694
      %v919 = vpack.c.b16 %v703, %v695
      %v920 = vpack.c.b16 %v712, %v704
      %v921 = vpack.c.b16 %v713, %v705
      %v922 = vpack.c.b16 %v714, %v706
      %v923 = vpack.c.b16 %v715, %v707
      %v924 = vpack.c.b16 %v716, %v708
      %v925 = vpack.c.b16 %v717, %v709
      %v926 = vpack.c.b16 %v718, %v710
      %v927 = vpack.c.b16 %v719, %v711
      %v928 = vpack.c.b16 %v728, %v720
      %v929 = vpack.c.b16 %v729, %v721
      %v930 = vpack.c.b16 %v730, %v722
      %v931 = vpack.c.b16 %v731, %v723
      %v932 = vpack.c.b16 %v732, %v724
      %v933 = vpack.c.b16 %v733, %v725
      %v934 = vpack.c.b16 %v734, %v726
      %v935 = vpack.c.b16 %v735, %v727
      %v936 = vpack.c.b16 %v744, %v736
      %v937 = vpack.c.b16 %v745, %v737
      %v938 = vpack.c.b16 %v746, %v738
      %v939 = vpack.c.b16 %v747, %v739
      %v940 = vpack.c.b16 %v748, %v740
      %v941 = vpack.c.b16 %v749, %v741
      %v942 = vpack.c.b16 %v750, %v742
      %v943 = vpack.c.b16 %v751, %v743
      %v944 = vpack.c.b16 %v760, %v752
      %v945 = vpack.c.b16 %v761, %v753
      %v946 = vpack.c.b16 %v762, %v754
      %v947 = vpack.c.b16 %v763, %v755
      %v948 = vpack.c.b16 %v764, %v756
      %v949 = vpack.c.b16 %v765, %v757
      %v950 = vpack.c.b16 %v766, %v758
      %v951 = vpack.c.b16 %v767, %v759
      %v952 = vpack.c.b16 %v776, %v768
      %v953 = vpack.c.b16 %v777, %v769
      %v954 = vpack.c.b16 %v778, %v770
      %v955 = vpack.c.b16 %v779, %v771
      %v956 = vpack.c.b16 %v780, %v772
      %v957 = vpack.c.b16 %v781, %v773
      %v958 = vpack.c.b16 %v782, %v774
      %v959 = vpack.c.b16 %v783, %v775
      %v960 = vpack.c.b16 %v792, %v784
      %v961 = vpack.c.b16 %v793, %v785
      %v962 = vpack.c.b16 %v794, %v786
      %v963 = vpack.c.b16 %v795, %v787
      %v964 = vpack.c.b16 %v796, %v788
      %v965 = vpack.c.b16 %v797, %v789
      %v966 = vpack.c.b16 %v798, %v790
      %v967 = vpack.c.b16 %v799, %v791
      %v968 = vpack.c.b16 %v808, %v800
      %v969 = vpack.c.b16 %v809, %v801
      %v970 = vpack.c.b16 %v810, %v802
      %v971 = vpack.c.b16 %v811, %v803
      %v972 = vpack.c.b16 %v812, %v804
      %v973 = vpack.c.b16 %v813, %v805
      %v974 = vpack.c.b16 %v814, %v806
      %v975 = vpack.c.b16 %v815, %v807
      %v976 = vpack.c.b16 %v824, %v816
      %v977 = vpack.c.b16 %v825, %v817
      %v978 = vpack.c.b16 %v826, %v818
      %v979 = vpack.c.b16 %v827, %v819
      %v980 = vpack.c.b16 %v828, %v820
      %v981 = vpack.c.b16 %v829, %v821
      %v982 = vpack.c.b16 %v830, %v822
      %v983 = vpack.c.b16 %v831, %v823
      %v984 = vpack.c.b16 %v840, %v832
      %v985 = vpack.c.b16 %v841, %v833
      %v986 = vpack.c.b16 %v842, %v834
      %v987 = vpack.c.b16 %v843, %v835
      %v988 = vpack.c.b16 %v844, %v836
      %v989 = vpack.c.b16 %v845, %v837
      %v990 = vpack.c.b16 %v846, %v838
      %v991 = vpack.c.b16 %v847, %v839
      %v992 = vpack.c.b16 %v856, %v848
      %v993 = vpack.c.b16 %v857, %v849
      %v994 = vpack.c.b16 %v858, %v850
      %v995 = vpack.c.b16 %v859, %v851
      %v996 = vpack.c.b16 %v860, %v852
      %v997 = vpack.c.b16 %v861, %v853
      %v998 = vpack.c.b16 %v862, %v854
      %v999 = vpack.c.b16 %v863, %v855
      %v1000 = vpack.c.b16 %v872, %v864
      %v1001 = vpack.c.b16 %v873, %v865
      %v1002 = vpack.c.b16 %v874, %v866
      %v1003 = vpack.c.b16 %v875, %v867
      %v1004 = vpack.c.b16 %v876, %v868
      %v1005 = vpack.c.b16 %v877, %v869
      %v1006 = vpack.c.b16 %v878, %v870
      %v1007 = vpack.c.b16 %v879, %v871
      %1136 = vmatprep.subr.bf16.mxu0 %v881
      %1137 = vmatpush1.bf16.msra.mxu0 %v880
      %1138 = vmatprep.subr.bf16.mxu0 %v889
      %1139 = vmatpush1.bf16.msra.mxu0 %v888
      %1140 = vmatprep.subr.bf16.mxu0 %v897
      %1141 = vmatpush1.bf16.msra.mxu0 %v896
      %1142 = vmatprep.subr.bf16.mxu0 %v905
      %1143 = vmatpush1.bf16.msra.mxu0 %v904
      %1144 = vmatprep.subr.bf16.mxu0 %v913
      %1145 = vmatpush1.bf16.msra.mxu0 %v912
      %1146 = vmatprep.subr.bf16.mxu0 %v921
      %1147 = vmatpush1.bf16.msra.mxu0 %v920
      %1148 = vmatprep.subr.bf16.mxu0 %v929
      %1149 = vmatpush1.bf16.msra.mxu0 %v928
      %1150 = vmatprep.subr.bf16.mxu0 %v937
      %1151 = vmatpush1.bf16.msra.mxu0 %v936
      %1152 = vmatprep.subr.bf16.mxu0 %v945
      %1153 = vmatpush1.bf16.msra.mxu0 %v944
      %1154 = vmatprep.subr.bf16.mxu0 %v953
      %1155 = vmatpush1.bf16.msra.mxu0 %v952
      %1156 = vmatprep.subr.bf16.mxu0 %v961
      %1157 = vmatpush1.bf16.msra.mxu0 %v960
      %1158 = vmatprep.subr.bf16.mxu0 %v969
      %1159 = vmatpush1.bf16.msra.mxu0 %v968
      %1160 = vmatprep.subr.bf16.mxu0 %v977
      %1161 = vmatpush1.bf16.msra.mxu0 %v976
      %1162 = vmatprep.subr.bf16.mxu0 %v985
      %1163 = vmatpush1.bf16.msra.mxu0 %v984
      %1164 = vmatprep.subr.bf16.mxu0 %v993
      %1165 = vmatpush1.bf16.msra.mxu0 %v992
      %1166 = vmatprep.subr.bf16.mxu0 %v1001
      %1167 = vmatpush1.bf16.msra.mxu0 %v1000
      %1168 = vmatprep.mubr.bf16.mxu0 %v361
      %1169 = vmatmul.mubr.bf16.gmra.mrb[0].mxu0 %v360
      %v1170 = vpop.f32.mrb[0].mxu0
      %v1171 = vadd.f32 %v494, %v1170
      %v1172 = vpop.f32.mrb[0].mxu0
      %v1173 = vadd.f32 %v494, %v1172
      %v1174 = vpop.f32.mrb[0].mxu0
      %v1175 = vpop.f32.mrb[0].mxu0
      %1176 = vdwg.mxu0
      %1177 = vmatprep.subr.bf16.mxu0 %v883
      %1178 = vmatpush1.bf16.msra.mxu0 %v882
      %1179 = vmatprep.subr.bf16.mxu0 %v891
      %1180 = vmatpush1.bf16.msra.mxu0 %v890
      %1181 = vmatprep.subr.bf16.mxu0 %v899
      %1182 = vmatpush1.bf16.msra.mxu0 %v898
      %1183 = vmatprep.subr.bf16.mxu0 %v907
      %1184 = vmatpush1.bf16.msra.mxu0 %v906
      %1185 = vmatprep.subr.bf16.mxu0 %v915
      %1186 = vmatpush1.bf16.msra.mxu0 %v914
      %1187 = vmatprep.subr.bf16.mxu0 %v923
      %1188 = vmatpush1.bf16.msra.mxu0 %v922
      %1189 = vmatprep.subr.bf16.mxu0 %v931
      %1190 = vmatpush1.bf16.msra.mxu0 %v930
      %1191 = vmatprep.subr.bf16.mxu0 %v939
      %1192 = vmatpush1.bf16.msra.mxu0 %v938
      %1193 = vmatprep.subr.bf16.mxu0 %v947
      %1194 = vmatpush1.bf16.msra.mxu0 %v946
      %1195 = vmatprep.subr.bf16.mxu0 %v955
      %1196 = vmatpush1.bf16.msra.mxu0 %v954
      %1197 = vmatprep.subr.bf16.mxu0 %v963
      %1198 = vmatpush1.bf16.msra.mxu0 %v962
      %1199 = vmatprep.subr.bf16.mxu0 %v971
      %1200 = vmatpush1.bf16.msra.mxu0 %v970
      %1201 = vmatprep.subr.bf16.mxu0 %v979
      %1202 = vmatpush1.bf16.msra.mxu0 %v978
      %1203 = vmatprep.subr.bf16.mxu0 %v987
      %1204 = vmatpush1.bf16.msra.mxu0 %v986
      %1205 = vmatprep.subr.bf16.mxu0 %v995
      %1206 = vmatpush1.bf16.msra.mxu0 %v994
      %1207 = vmatprep.subr.bf16.mxu0 %v1003
      %1208 = vmatpush1.bf16.msra.mxu0 %v1002
      %1209 = vmatprep.mubr.bf16.mxu0 %v361
      %1210 = vmatmul.mubr.bf16.gmra.mrb[0].mxu0 %v360
      %v1211 = vpop.f32.mrb[0].mxu0
      %v1212 = vadd.f32 %v494, %v1211
      %v1213 = vpop.f32.mrb[0].mxu0
      %v1214 = vadd.f32 %v494, %v1213
      %v1215 = vpop.f32.mrb[0].mxu0
      %v1216 = vpop.f32.mrb[0].mxu0
      %1217 = vdwg.mxu0
      %1218 = vmatprep.subr.bf16.mxu0 %v885
      %1219 = vmatpush1.bf16.msra.mxu0 %v884
      %1220 = vmatprep.subr.bf16.mxu0 %v893
      %1221 = vmatpush1.bf16.msra.mxu0 %v892
      %1222 = vmatprep.subr.bf16.mxu0 %v901
      %1223 = vmatpush1.bf16.msra.mxu0 %v900
      %1224 = vmatprep.subr.bf16.mxu0 %v909
      %1225 = vmatpush1.bf16.msra.mxu0 %v908
      %1226 = vmatprep.subr.bf16.mxu0 %v917
      %1227 = vmatpush1.bf16.msra.mxu0 %v916
      %1228 = vmatprep.subr.bf16.mxu0 %v925
      %1229 = vmatpush1.bf16.msra.mxu0 %v924
      %1230 = vmatprep.subr.bf16.mxu0 %v933
      %1231 = vmatpush1.bf16.msra.mxu0 %v932
      %1232 = vmatprep.subr.bf16.mxu0 %v941
      %1233 = vmatpush1.bf16.msra.mxu0 %v940
      %1234 = vmatprep.subr.bf16.mxu0 %v949
      %1235 = vmatpush1.bf16.msra.mxu0 %v948
      %1236 = vmatprep.subr.bf16.mxu0 %v957
      %1237 = vmatpush1.bf16.msra.mxu0 %v956
      %1238 = vmatprep.subr.bf16.mxu0 %v965
      %1239 = vmatpush1.bf16.msra.mxu0 %v964
      %1240 = vmatprep.subr.bf16.mxu0 %v973
      %1241 = vmatpush1.bf16.msra.mxu0 %v972
      %1242 = vmatprep.subr.bf16.mxu0 %v981
      %1243 = vmatpush1.bf16.msra.mxu0 %v980
      %1244 = vmatprep.subr.bf16.mxu0 %v989
      %1245 = vmatpush1.bf16.msra.mxu0 %v988
      %1246 = vmatprep.subr.bf16.mxu0 %v997
      %1247 = vmatpush1.bf16.msra.mxu0 %v996
      %1248 = vmatprep.subr.bf16.mxu0 %v1005
      %1249 = vmatpush1.bf16.msra.mxu0 %v1004
      %1250 = vmatprep.mubr.bf16.mxu0 %v361
      %1251 = vmatmul.mubr.bf16.gmra.mrb[0].mxu0 %v360
      %v1252 = vpop.f32.mrb[0].mxu0
      %v1253 = vadd.f32 %v494, %v1252
      %v1254 = vpop.f32.mrb[0].mxu0
      %v1255 = vadd.f32 %v494, %v1254
      %v1256 = vpop.f32.mrb[0].mxu0
      %v1257 = vpop.f32.mrb[0].mxu0
      %1258 = vdwg.mxu0
      %1259 = vmatprep.subr.bf16.mxu0 %v887
      %1260 = vmatpush1.bf16.msra.mxu0 %v886
      %1261 = vmatprep.subr.bf16.mxu0 %v895
      %1262 = vmatpush1.bf16.msra.mxu0 %v894
      %1263 = vmatprep.subr.bf16.mxu0 %v903
      %1264 = vmatpush1.bf16.msra.mxu0 %v902
      %1265 = vmatprep.subr.bf16.mxu0 %v911
      %1266 = vmatpush1.bf16.msra.mxu0 %v910
      %1267 = vmatprep.subr.bf16.mxu0 %v919
      %1268 = vmatpush1.bf16.msra.mxu0 %v918
      %1269 = vmatprep.subr.bf16.mxu0 %v927
      %1270 = vmatpush1.bf16.msra.mxu0 %v926
      %1271 = vmatprep.subr.bf16.mxu0 %v935
      %1272 = vmatpush1.bf16.msra.mxu0 %v934
      %1273 = vmatprep.subr.bf16.mxu0 %v943
      %1274 = vmatpush1.bf16.msra.mxu0 %v942
      %1275 = vmatprep.subr.bf16.mxu0 %v951
      %1276 = vmatpush1.bf16.msra.mxu0 %v950
      %1277 = vmatprep.subr.bf16.mxu0 %v959
      %1278 = vmatpush1.bf16.msra.mxu0 %v958
      %1279 = vmatprep.subr.bf16.mxu0 %v967
      %1280 = vmatpush1.bf16.msra.mxu0 %v966
      %1281 = vmatprep.subr.bf16.mxu0 %v975
      %1282 = vmatpush1.bf16.msra.mxu0 %v974
      %1283 = vmatprep.subr.bf16.mxu0 %v983
      %1284 = vmatpush1.bf16.msra.mxu0 %v982
      %1285 = vmatprep.subr.bf16.mxu0 %v991
      %1286 = vmatpush1.bf16.msra.mxu0 %v990
      %1287 = vmatprep.subr.bf16.mxu0 %v999
      %1288 = vmatpush1.bf16.msra.mxu0 %v998
      %1289 = vmatprep.subr.bf16.mxu0 %v1007
      %1290 = vmatpush1.bf16.msra.mxu0 %v1006
      %1291 = vmatprep.mubr.bf16.mxu0 %v361
      %1292 = vmatmul.mubr.bf16.gmra.mrb[0].mxu0 %v360
      %v1293 = vpop.f32.mrb[0].mxu0
      %v1294 = vadd.f32 %v494, %v1293
      %v1295 = vpop.f32.mrb[0].mxu0
      %v1296 = vadd.f32 %v494, %v1295
      %v1297 = vpop.f32.mrb[0].mxu0
      %v1298 = vpop.f32.mrb[0].mxu0
      %1299 = vdwg.mxu0
      %v1308 = vcombine.low %v1171, %v1173
      %v1309 = vcombine.low %v1212, %v1214
      %v1310 = vcombine.low %v1253, %v1255
      %v1311 = vcombine.low %v1294, %v1296
      %1316 = vst [vmem:[%s298] sm:$0x33] %v1308
      %1317 = vst [vmem:[%s298 + $0x8] sm:$0x33] %v1309
      %1318 = vst [vmem:[%s298 + $0x10] sm:$0x33] %v1310
      %1319 = vst [vmem:[%s298 + $0x18] sm:$0x33] %v1311
      %v1320 = vld [vmem:[%s288] sm:$0xff]
      %v1321 = vld [vmem:[%s288 + $0x8] sm:$0xff]
      %v1324 = vcombine.low %v1320, %v1320
      %v1326 = vunpack.c.l.s4 1983009808
      %v1327 = vunpack.c.0.s8 %v1326
      %v1328 = vlaneseq
      %v1329 = vshrl.u32 %v1328, 7
      %v1330 = vsub.s32 %v1327, %v1329
      %v1331 = vrot.slane %v1324, %v1330
      %v1333 = vunpack.c.l.s4 1983009808
      %v1334 = vunpack.c.0.s8 %v1333
      %v1335 = vlaneseq
      %v1336 = vshrl.u32 %v1335, 7
      %v1337 = vsub.s32 %v1334, %v1336
      %v1338 = vrot.slane %v1320, %v1337
      %v1339 = vcombine.low %v1321, %v1321
      %v1341 = vunpack.c.l.s4 1983009808
      %v1342 = vunpack.c.0.s8 %v1341
      %v1343 = vlaneseq
      %v1344 = vshrl.u32 %v1343, 7
      %v1345 = vsub.s32 %v1342, %v1344
      %v1346 = vrot.slane %v1339, %v1345
      %v1348 = vunpack.c.l.s4 1983009808
      %v1349 = vunpack.c.0.s8 %v1348
      %v1350 = vlaneseq
      %v1351 = vshrl.u32 %v1350, 7
      %v1352 = vsub.s32 %v1349, %v1351
      %v1353 = vrot.slane %v1321, %v1352
      %1358 = vst [vmem:[%s298] sm:$0xcc] %v1331
      %1359 = vst [vmem:[%s298 + $0x8] sm:$0xcc] %v1338
      %1360 = vst [vmem:[%s298 + $0x10] sm:$0xcc] %v1346
      %1361 = vst [vmem:[%s298 + $0x18] sm:$0xcc] %v1353
      %s1362 = smul.u32 8, %s21
      %p1363 = scmp.lt.s32.totalorder %s20, 1
      %s1364 = scalar_select %p1363, %s20, 1
      %p1365 = scmp.lt.s32.totalorder %s1362, 7
      %s1366 = scalar_select %p1365, %s1362, 7
      %s1367 = smul.addr %s1364, 8
      %s1368 = sadd.s32 %s1366, %s1367
      %s1369 = smul.addr %s1368, 4
      %s1370 = scalar_lea.vmem %s5, %s1369
      // Predicated region
      $region41: #{upsample_concat_pallas.1} parent=39 // pred_check
        %p1371 = pneg %p167
      $region42: #{upsample_concat_pallas.1} parent=39 // pred_check_branch
        %1373 = sbr.rel (%p1371) target = $region44
      $region43: #{upsample_concat_pallas.1} parent=39 // pred_region
        %s1374 = smul.u32 8, %s21
      $region44: #{upsample_concat_pallas.1} parent=39 // pred_fallthru
        _
    $region40: #{upsample_concat_pallas.1} parent=5 // pred_fallthru
      _
    %p1375 = scmp.le.s32.totalorder 2, %s11
    // Predicated region
    $region45: #{upsample_concat_pallas.1} parent=5 // pred_check
      %p1376 = pneg %p1375
    $region46: #{upsample_concat_pallas.1} parent=5 // pred_check_branch
      %1378 = sbr.rel (%p1376) target = $region48
    $region47: #{upsample_concat_pallas.1} parent=5 // pred_region
      %s1379 = ssub.s32 %s11, 2
      // Predicated region
      $region49: #{upsample_concat_pallas.1} parent=47 // pred_check
        %p1380 = pneg %p173
      $region50: #{upsample_concat_pallas.1} parent=47 // pred_check_branch
        %1382 = sbr.rel (%p1380) target = $region52
      $region51: #{upsample_concat_pallas.1} parent=47 // pred_region
        %s1383 = smul.u32 8, %s23
        %p1384 = scmp.lt.s32.totalorder %s22, 1
        %s1385 = scalar_select %p1384, %s22, 1
        %p1386 = scmp.lt.s32.totalorder %s1383, 7
        %s1387 = scalar_select %p1386, %s1383, 7
        %s1388 = smul.addr %s1385, 8
        %s1389 = sadd.s32 %s1387, %s1388
        %s1390 = smul.addr %s1389, 4
        %s1391 = scalar_lea.vmem %s5, %s1390
      $region52: #{upsample_concat_pallas.1} parent=47 // pred_fallthru
        _
    $region48: #{upsample_concat_pallas.1} parent=5 // pred_fallthru
      _
  $region6: #{upsample_concat_pallas.1} parent=0 // loop_footer
    %s15 = sadd.s32 1, %s11
  $region7: #{upsample_concat_pallas.1} parent=0 // loop_footer_branch
    %10 = sbr.rel target = $region3
  $region8: #{upsample_concat_pallas.1} parent=0 // loop_exit
    _

</llo_original>
